<compile_context>
chip_gen: v6e
topology: v6e:2x2x1
jax: 0.10.0
libtpu: 0.0.40
codegen_flags: <defaults>
</compile_context>

<pallas_src>
import jax
import jax.numpy as jnp
from jax.experimental import pallas as pl
from jax.experimental.pallas import tpu as pltpu

LANE = 128       # lane width (last dim)
ROW_ALIGN = 16   # batch-tile alignment (bf16 packs 16 rows per sublane group)


def _round_up(x, m):
    return (x + m - 1) // m * m


def _vmem_capacity_bytes():
    try:
        return int(pltpu.get_tpu_info().vmem_capacity_bytes)
    except Exception:
        return 128 * 1024 * 1024  # v5e/v6e default; v7x (64 MiB) found via the query


# ----------------------------- fused Pallas kernel -----------------------------


def _make_fused_mlp_kernel(layer_meta, compute_dtype):
    """Build the fused kernel body. layer_meta: tuple of (has_bias, relu) per layer."""

    def kernel(x_ref, *refs):
        o_ref = refs[-1]
        prm = refs[:-1]
        h = x_ref[...].astype(compute_dtype)   # in-kernel f32 -> bf16 cast (free VPU slot)
        acc = None
        i = 0
        for has_bias, relu in layer_meta:      # unrolled at trace time
            w = prm[i][...]                    # (Din_pad, Dout_pad), compute_dtype
            i += 1
            acc = jnp.dot(h, w, preferred_element_type=jnp.float32)
            if has_bias:
                acc = acc + prm[i][...]        # (1, Dout_pad), f32
                i += 1
            if relu:
                acc = jnp.maximum(acc, 0.0)
            h = acc.astype(compute_dtype)      # feed next MXU matmul in bf16
        o_ref[...] = acc.astype(o_ref.dtype)

    return kernel


# --------------------------- one-time parameter prep ---------------------------


def prepare_mlp_params(params, compute_dtype=jnp.bfloat16):
    """Pad + cast parameters ONCE (outside the per-call hot path)."""
    d_in = params[0]["w"].shape[0]
    dims = [d_in] + [p["w"].shape[1] for p in params]
    dims_pad = [_round_up(d, LANE) for d in dims]

    layer_meta = []
    op_args = []
    for li, p in enumerate(params):
        w = p["w"]
        w_pad = jnp.zeros((dims_pad[li], dims_pad[li + 1]), compute_dtype)
        w_pad = w_pad.at[: w.shape[0], : w.shape[1]].set(w.astype(compute_dtype))
        op_args.append(w_pad)
        has_bias = p["b"] is not None
        if has_bias:
            b = p["b"]
            b_pad = jnp.zeros((1, dims_pad[li + 1]), jnp.float32)
            b_pad = b_pad.at[:, : b.shape[1]].set(b.astype(jnp.float32))
            op_args.append(b_pad)
        layer_meta.append((has_bias, bool(p["relu"])))

    op_args = tuple(jax.device_put(a) for a in op_args)
    return {
        "compute_dtype": compute_dtype,
        "dims_pad": tuple(dims_pad),
        "layer_meta": tuple(layer_meta),
        "op_args": op_args,
        "d_in": d_in,
        "d_out": params[-1]["w"].shape[1],
    }


# ------------------------------- MLP forward -------------------------------


def mlp_forward(x, prepared, *, max_batch_tile=None):
    """Fused MLP forward: x (B, D_in) f32 -> (B, D_out) f32."""
    compute_dtype = prepared["compute_dtype"]
    dims_pad = prepared["dims_pad"]
    layer_meta = prepared["layer_meta"]
    op_args = prepared["op_args"]
    d_in = prepared["d_in"]
    d_out = prepared["d_out"]
    d_in_pad, d_out_pad = dims_pad[0], dims_pad[-1]

    B = x.shape[0]

    # Generation-aware VMEM budget / default batch tile.
    vmem_cap = _vmem_capacity_bytes()
    vmem_budget = int(0.85 * vmem_cap)
    if max_batch_tile is None:
        max_batch_tile = 256 if vmem_cap <= 64 * 1024 * 1024 else 512

    TM = _round_up(min(max_batch_tile, _round_up(B, ROW_ALIGN)), ROW_ALIGN)
    # Guarantee >=2 grid steps where possible so v7x's two TensorCores both get work.
    if _round_up(B, TM) // TM < 2 and TM >= 2 * ROW_ALIGN:
        TM = _round_up((TM + 1) // 2, ROW_ALIGN)
    B_pad = _round_up(B, TM)
    grid = (B_pad // TM,)

    # Pad x only if actually required; bf16 cast happens in-kernel, not here.
    if (B_pad != B) or (d_in_pad != d_in):
        x_in = jnp.pad(x, ((0, B_pad - B), (0, d_in_pad - d_in)))
    else:
        x_in = x

    # Resident, SINGLE-buffered parameter operands (index_map ignores the grid index).
    op_specs = [
        pl.BlockSpec(a.shape, lambda i: (0, 0), pipeline_mode=pl.Buffered(1))
        for a in op_args
    ]

    kernel = _make_fused_mlp_kernel(layer_meta, compute_dtype)

    # VMEM estimate: resident params (single-buffered) + double-buffered act tiles
    # + f32 intermediates.
    xbytes = jnp.dtype(x.dtype).itemsize
    weight_bytes = sum(int(a.size) * a.dtype.itemsize for a in op_args)
    act_bytes = 2 * TM * (d_in_pad * xbytes + d_out_pad * 4)
    inter_bytes = 2 * 4 * TM * max(dims_pad)
    est = weight_bytes + act_bytes + inter_bytes
    vmem_limit = int(min(vmem_budget, max(4 * est, 32 * 1024 * 1024)))
    if weight_bytes > vmem_budget // 2:
        # TODO(synk): weight-streaming fallback (K/N-tiled grid axis or pltpu.emit_pipeline)
        # for MLPs whose padded parameters exceed the per-generation VMEM budget.
        pass

    flops = 2 * B_pad * sum(dims_pad[i] * dims_pad[i + 1] for i in range(len(layer_meta)))
    bytes_accessed = B_pad * d_in_pad * xbytes + weight_bytes + B_pad * d_out_pad * 4
    cost = pl.CostEstimate(flops=flops, transcendentals=0, bytes_accessed=bytes_accessed)

    out = pl.pallas_call(
        kernel,
        out_shape=jax.ShapeDtypeStruct((B_pad, d_out_pad), x.dtype),
        grid=grid,
        in_specs=[pl.BlockSpec((TM, d_in_pad), lambda i: (i, 0))] + op_specs,
        out_specs=pl.BlockSpec((TM, d_out_pad), lambda i: (i, 0)),
        compiler_params=pltpu.CompilerParams(
            dimension_semantics=("parallel",),
            vmem_limit_bytes=vmem_limit,
        ),
        cost_estimate=cost,
    )(x_in, *op_args)

    return out[:B, :d_out]


# ------------------------------ parameter init ------------------------------


def init_mlp_params(key, input_shape, n_hidden, layer_size, output_shape, bias=False):
    """Deterministic init mirroring the PyTorch module's layer shapes.

    Weights stored as (in, out) = transpose of torch Linear.weight; bias as (1, out).
    """
    if isinstance(layer_size, int):
        layer_size = [layer_size] * n_hidden

    params = []
    if n_hidden == 0:
        key, sub = jax.random.split(key)
        w = jax.random.normal(sub, (input_shape, output_shape), jnp.float32) * 0.1
        params.append({"w": w, "b": None, "relu": False})
        return params

    prev = input_shape
    for layer in range(n_hidden):
        cur = layer_size[layer]
        key, kw, kb = jax.random.split(key, 3)
        w = jax.random.normal(kw, (prev, cur), jnp.float32) * 0.1
        b = (jax.random.normal(kb, (1, cur), jnp.float32) * 0.1) if bias else None
        params.append({"w": w, "b": b, "relu": True})  # _MLPBlock: Linear -> Dropout -> ReLU
        prev = cur

    key, kw = jax.random.split(key)
    w = jax.random.normal(kw, (prev, output_shape), jnp.float32) * 0.1
    params.append({"w": w, "b": None, "relu": False})  # final Linear(bias=False)
    # TODO(synk): iterative_whitening (IterNorm) raises NotImplementedError upstream; not implemented.
    return params


# ---------------------------------- main -----------------------------------

if __name__ == "__main__":
    key = jax.random.PRNGKey(0)
    k_x, k_p = jax.random.split(key)

    batch = 4
    input_shape = 16
    n_hidden = 2
    layer_size = 32
    output_shape = 8

    x = jax.random.normal(k_x, (batch, input_shape), jnp.float32)
    params = init_mlp_params(
        k_p, input_shape, n_hidden, layer_size, output_shape, bias=False
    )
    prepared = prepare_mlp_params(params)  # one-time pad + bf16 cast of weights

    out = mlp_forward(x, prepared)
    out = jax.block_until_ready(out)

    # Pure-JAX reference with the same bf16-operand / f32-accumulation semantics.
    compute_dtype = jnp.bfloat16
    ref = x
    for layer in params:
        ref = jnp.dot(
            ref.astype(compute_dtype),
            layer["w"].astype(compute_dtype),
            preferred_element_type=jnp.float32,
        )
        if layer["b"] is not None:
            ref = ref + layer["b"]
        if layer["relu"]:
            ref = jnp.maximum(ref, 0.0)

    assert out.shape == (batch, output_shape)
    assert jnp.allclose(out, ref, atol=1e-4, rtol=1e-4), float(
        jnp.max(jnp.abs(out - ref))
    )

    print("KERNEL_OK")
</pallas_src>

<mosaic_0001>
module attributes {stable_mosaic.version = 11 : i64} {
  func.func @kernel(%arg0: i32, %arg1: memref<16x128xf32, #tpu.memory_space<vmem>>, %arg2: memref<128x128xbf16, #tpu.memory_space<vmem>>, %arg3: memref<128x128xbf16, #tpu.memory_space<vmem>>, %arg4: memref<128x128xbf16, #tpu.memory_space<vmem>>, %arg5: memref<16x128xf32, #tpu.memory_space<vmem>>) attributes {dimension_semantics = [#tpu.dimension_semantics<parallel>], iteration_bounds = array<i64: 1>, scalar_prefetch = 0 : i64, scratch_operands = 0 : i64, tpu.core_type = #tpu.core_type<tc>, window_params = [{transform_indices = @transform_0, window_bounds = array<i64: 16, 128>}, {pipeline_mode = #tpu.pipeline_mode<synchronous>, transform_indices = @transform_1, window_bounds = array<i64: 128, 128>}, {pipeline_mode = #tpu.pipeline_mode<synchronous>, transform_indices = @transform_2, window_bounds = array<i64: 128, 128>}, {pipeline_mode = #tpu.pipeline_mode<synchronous>, transform_indices = @transform_3, window_bounds = array<i64: 128, 128>}, {transform_indices = @transform_4, window_bounds = array<i64: 16, 128>}]} {
    %c0 = arith.constant 0 : index
    %c0_0 = arith.constant 0 : index
    %0 = vector.load %arg1[%c0, %c0_0] : memref<16x128xf32, #tpu.memory_space<vmem>>, vector<16x128xf32>
    %1 = arith.truncf %0 : vector<16x128xf32> to vector<16x128xbf16>
    %c0_1 = arith.constant 0 : index
    %c0_2 = arith.constant 0 : index
    %2 = vector.load %arg2[%c0_1, %c0_2] : memref<128x128xbf16, #tpu.memory_space<vmem>>, vector<128x128xbf16>
    %cst = arith.constant dense<0.000000e+00> : vector<16x128xf32>
    %3 = tpu.matmul %1, %2, %cst {dimension_numbers = #tpu.dot_dimension_numbers<[1], [0], [0], [1], [0, 0, 1, 1], [], []>} : vector<16x128xbf16>, vector<128x128xbf16>, vector<16x128xf32> -> vector<16x128xf32>
    %cst_3 = arith.constant 0.000000e+00 : f32
    %4 = vector.broadcast %cst_3 : f32 to vector<16x128xf32>
    %5 = arith.maximumf %3, %4 : vector<16x128xf32>
    %6 = arith.truncf %5 : vector<16x128xf32> to vector<16x128xbf16>
    %c0_4 = arith.constant 0 : index
    %c0_5 = arith.constant 0 : index
    %7 = vector.load %arg3[%c0_4, %c0_5] : memref<128x128xbf16, #tpu.memory_space<vmem>>, vector<128x128xbf16>
    %cst_6 = arith.constant dense<0.000000e+00> : vector<16x128xf32>
    %8 = tpu.matmul %6, %7, %cst_6 {dimension_numbers = #tpu.dot_dimension_numbers<[1], [0], [0], [1], [0, 0, 1, 1], [], []>} : vector<16x128xbf16>, vector<128x128xbf16>, vector<16x128xf32> -> vector<16x128xf32>
    %cst_7 = arith.constant 0.000000e+00 : f32
    %9 = vector.broadcast %cst_7 : f32 to vector<16x128xf32>
    %10 = arith.maximumf %8, %9 : vector<16x128xf32>
    %11 = arith.truncf %10 : vector<16x128xf32> to vector<16x128xbf16>
    %c0_8 = arith.constant 0 : index
    %c0_9 = arith.constant 0 : index
    %12 = vector.load %arg4[%c0_8, %c0_9] : memref<128x128xbf16, #tpu.memory_space<vmem>>, vector<128x128xbf16>
    %cst_10 = arith.constant dense<0.000000e+00> : vector<16x128xf32>
    %13 = tpu.matmul %11, %12, %cst_10 {dimension_numbers = #tpu.dot_dimension_numbers<[1], [0], [0], [1], [0, 0, 1, 1], [], []>} : vector<16x128xbf16>, vector<128x128xbf16>, vector<16x128xf32> -> vector<16x128xf32>
    %c0_11 = arith.constant 0 : index
    %c0_12 = arith.constant 0 : index
    %14 = vector.load %arg5[%c0_11, %c0_12] : memref<16x128xf32, #tpu.memory_space<vmem>>, vector<16x128xf32>
    tpu.vector_store %arg5[%c0_11, %c0_12], %13 {strides = array<i32>} : memref<16x128xf32, #tpu.memory_space<vmem>>, vector<16x128xf32>,
    return
  }
  func.func @transform_0(%arg0: i32) -> (i32, i32) {
    %c0_i32 = arith.constant 0 : i32
    %c0_i32_0 = arith.constant 0 : i32
    return %arg0, %c0_i32 : i32, i32
  }
  func.func @transform_1(%arg0: i32) -> (i32, i32) {
    %c0_i32 = arith.constant 0 : i32
    %c0_i32_0 = arith.constant 0 : i32
    %c0_i32_1 = arith.constant 0 : i32
    return %c0_i32, %c0_i32_0 : i32, i32
  }
  func.func @transform_2(%arg0: i32) -> (i32, i32) {
    %c0_i32 = arith.constant 0 : i32
    %c0_i32_0 = arith.constant 0 : i32
    %c0_i32_1 = arith.constant 0 : i32
    return %c0_i32, %c0_i32_0 : i32, i32
  }
  func.func @transform_3(%arg0: i32) -> (i32, i32) {
    %c0_i32 = arith.constant 0 : i32
    %c0_i32_0 = arith.constant 0 : i32
    %c0_i32_1 = arith.constant 0 : i32
    return %c0_i32, %c0_i32_0 : i32, i32
  }
  func.func @transform_4(%arg0: i32) -> (i32, i32) {
    %c0_i32 = arith.constant 0 : i32
    %c0_i32_0 = arith.constant 0 : i32
    return %arg0, %c0_i32 : i32, i32
  }
}

</mosaic_0001>

<llo_original>
// kernel: tpu_custom_call.1
$region0: #{tpu_custom_call.1}
  #allocation0 [shape = 'u32[]', space=smem, size = 0x4, offset = 0x4, fixed_abs, tag = 'smem constant byte address 0x4 - core index']
  #allocation1 [shape = 'u32[144,128]{1,0:T(1,128)}', space=vmem, size = 0x12000, scoped, tag = 'internal scratch']
  %s0 = inlined_call_operand.hbm [shape: f32[16,128], index: 0, kind: input, shape index: {}]
  %s1 = inlined_call_operand.hbm [shape: bf16[128,128], index: 1, kind: input, shape index: {}]
  %s2 = inlined_call_operand.hbm [shape: bf16[128,128], index: 2, kind: input, shape index: {}]
  %s3 = inlined_call_operand.hbm [shape: bf16[128,128], index: 3, kind: input, shape index: {}]
  %s4 = inlined_call_operand.hbm [shape: f32[16,128], index: 4, kind: output, shape index: {}]
  %s5 = sld [smem:[#allocation0]]
  $region42: #{tpu_custom_call.1} parent=0
    _
  %s7 = ssub.s32 1, %s5
  %s8 = scalar_select 0, %s7, %s5
  $region1: #{tpu_custom_call.1} parent=0
    #allocation2 [shape = 'u8[8192]{0}', space=vmem, size = 0x2000, scoped, tag = 'input window, operand 0, single buffered']
    #allocation3 [shape = 's32[1]{0}', space=sflag, size = 0x4, scoped, tag = 'scoped memory for tpu_custom_call.1']
    #allocation4 [shape = 's32[1]{0}', space=sflag, size = 0x4, scoped, tag = 'scoped memory for tpu_custom_call.1']
    #allocation5 [shape = 'u8[32768]{0}', space=vmem, size = 0x8000, scoped, tag = 'input window, operand 1, single buffered']
    #allocation6 [shape = 's32[1]{0}', space=sflag, size = 0x4, scoped, tag = 'scoped memory for tpu_custom_call.1']
    #allocation7 [shape = 'u8[32768]{0}', space=vmem, size = 0x8000, scoped, tag = 'input window, operand 2, single buffered']
    #allocation8 [shape = 'u8[32768]{0}', space=vmem, size = 0x8000, scoped, tag = 'input window, operand 3, single buffered']
    #allocation9 [shape = 's32[1]{0}', space=sflag, size = 0x4, scoped, tag = 'scoped memory for tpu_custom_call.1']
    #allocation10 [shape = 'u8[8192]{0}', space=vmem, size = 0x2000, scoped, tag = 'output window, operand 0, single buffered']
    %9 = vsyncpa [#allocation3], 0
    %10 = vsyncpa [#allocation6], 0
    %11 = vsyncpa [#allocation9], 0
    %12 = vsyncpa [#allocation4], 0
    // Predicated region
    $region2: #{tpu_custom_call.1} parent=1 // pred_check
      _
    $region3: #{tpu_custom_call.1} parent=1 // pred_check_branch
      %14 = sbr.rel (0) target = $region5
    $region4: #{tpu_custom_call.1} parent=1 // pred_region
      %s16 = ssub.s32 256, 256
      %17 = vsyncadd [#allocation3], %s16
      %s18 = sshll.u32 [#allocation2], 4
      %s19 = int_to_ptr.vmem [resolvable:$true] %s18
      %24 = dma.hbm_to_vmem [thread:$0]  %s0, 256, %s19, [#allocation3], 128, 128, 8
    $region5: #{tpu_custom_call.1} parent=1 // pred_fallthru
      _
    // Predicated region
    $region6: #{tpu_custom_call.1} parent=1 // pred_check
      _
    $region7: #{tpu_custom_call.1} parent=1 // pred_check_branch
      %26 = sbr.rel (0) target = $region9
    $region8: #{tpu_custom_call.1} parent=1 // pred_region
      %s28 = ssub.s32 1024, 1024
      %29 = vsyncadd [#allocation6], %s28
      %s30 = sshll.u32 [#allocation5], 4
      %s31 = int_to_ptr.vmem [resolvable:$true] %s30
      %36 = dma.hbm_to_vmem [thread:$0]  %s1, 1024, %s31, [#allocation6], 64, 64, 4
    $region9: #{tpu_custom_call.1} parent=1 // pred_fallthru
      _
    // Predicated region
    $region10: #{tpu_custom_call.1} parent=1 // pred_check
      _
    $region11: #{tpu_custom_call.1} parent=1 // pred_check_branch
      %38 = sbr.rel (0) target = $region13
    $region12: #{tpu_custom_call.1} parent=1 // pred_region
      %s40 = ssub.s32 1024, 1024
      %41 = vsyncadd [#allocation6], %s40
      %s42 = sshll.u32 [#allocation7], 4
      %s43 = int_to_ptr.vmem [resolvable:$true] %s42
      %48 = dma.hbm_to_vmem [thread:$0]  %s2, 1024, %s43, [#allocation6], 64, 64, 4
    $region13: #{tpu_custom_call.1} parent=1 // pred_fallthru
      _
    // Predicated region
    $region14: #{tpu_custom_call.1} parent=1 // pred_check
      _
    $region15: #{tpu_custom_call.1} parent=1 // pred_check_branch
      %50 = sbr.rel (0) target = $region17
    $region16: #{tpu_custom_call.1} parent=1 // pred_region
      %s52 = ssub.s32 1024, 1024
      %53 = vsyncadd [#allocation9], %s52
      %s54 = sshll.u32 [#allocation8], 4
      %s55 = int_to_ptr.vmem [resolvable:$true] %s54
      %60 = dma.hbm_to_vmem [thread:$0]  %s3, 1024, %s55, [#allocation9], 64, 64, 4
    $region17: #{tpu_custom_call.1} parent=1 // pred_fallthru
      _
    // Predicated region
    $region18: #{tpu_custom_call.1} parent=1 // pred_check
      _
    $region19: #{tpu_custom_call.1} parent=1 // pred_check_branch
      %62 = sbr.rel (0) target = $region21
    $region20: #{tpu_custom_call.1} parent=1 // pred_region
      %63 = dma.done [#allocation3], 256
    $region21: #{tpu_custom_call.1} parent=1 // pred_fallthru
      _
    // Predicated region
    $region22: #{tpu_custom_call.1} parent=1 // pred_check
      _
    $region23: #{tpu_custom_call.1} parent=1 // pred_check_branch
      %65 = sbr.rel (0) target = $region25
    $region24: #{tpu_custom_call.1} parent=1 // pred_region
      %66 = dma.done [#allocation6], 1024
    $region25: #{tpu_custom_call.1} parent=1 // pred_fallthru
      _
    // Predicated region
    $region26: #{tpu_custom_call.1} parent=1 // pred_check
      _
    $region27: #{tpu_custom_call.1} parent=1 // pred_check_branch
      %68 = sbr.rel (0) target = $region29
    $region28: #{tpu_custom_call.1} parent=1 // pred_region
      %69 = dma.done [#allocation6], 1024
    $region29: #{tpu_custom_call.1} parent=1 // pred_fallthru
      _
    // Predicated region
    $region30: #{tpu_custom_call.1} parent=1 // pred_check
      _
    $region31: #{tpu_custom_call.1} parent=1 // pred_check_branch
      %71 = sbr.rel (0) target = $region33
    $region32: #{tpu_custom_call.1} parent=1 // pred_region
      %72 = dma.done [#allocation9], 1024
    $region33: #{tpu_custom_call.1} parent=1 // pred_fallthru
      _
    %v74 = vld [vmem:[#allocation2] sm:$0xff]
    %v75 = vld [vmem:[#allocation2 + $0x8] sm:$0xff]
    %v76 = vpack.c.bf16 %v75, %v74
    %v77 = vld [vmem:[#allocation5] sm:$0xf]
    %v78 = vld [vmem:[#allocation5 + $0x4] sm:$0xf]
    %v79 = vld [vmem:[#allocation5 + $0x8] sm:$0xf]
    %v80 = vld [vmem:[#allocation5 + $0xc] sm:$0xf]
    %v81 = vld [vmem:[#allocation5 + $0x10] sm:$0xf]
    %v82 = vld [vmem:[#allocation5 + $0x14] sm:$0xf]
    %v83 = vld [vmem:[#allocation5 + $0x18] sm:$0xf]
    %v84 = vld [vmem:[#allocation5 + $0x1c] sm:$0xf]
    %v85 = vld [vmem:[#allocation5 + $0x20] sm:$0xf]
    %v86 = vld [vmem:[#allocation5 + $0x24] sm:$0xf]
    %v87 = vld [vmem:[#allocation5 + $0x28] sm:$0xf]
    %v88 = vld [vmem:[#allocation5 + $0x2c] sm:$0xf]
    %v89 = vld [vmem:[#allocation5 + $0x30] sm:$0xf]
    %v90 = vld [vmem:[#allocation5 + $0x34] sm:$0xf]
    %v91 = vld [vmem:[#allocation5 + $0x38] sm:$0xf]
    %v92 = vld [vmem:[#allocation5 + $0x3c] sm:$0xf]
    %v109 = vunpack.c.l.b16 %v77
    %v110 = vunpack.c.l.b16 %v78
    %v111 = vunpack.c.l.b16 %v79
    %v112 = vunpack.c.l.b16 %v80
    %v113 = vunpack.c.l.b16 %v81
    %v114 = vunpack.c.l.b16 %v82
    %v115 = vunpack.c.l.b16 %v83
    %v116 = vunpack.c.l.b16 %v84
    %v117 = vunpack.c.l.b16 %v85
    %v118 = vunpack.c.l.b16 %v86
    %v119 = vunpack.c.l.b16 %v87
    %v120 = vunpack.c.l.b16 %v88
    %v121 = vunpack.c.l.b16 %v89
    %v122 = vunpack.c.l.b16 %v90
    %v123 = vunpack.c.l.b16 %v91
    %v124 = vunpack.c.l.b16 %v92
    %v125 = vpack.c.b16 %v110, %v109
    %v126 = vpack.c.b16 %v112, %v111
    %v127 = vpack.c.b16 %v114, %v113
    %v128 = vpack.c.b16 %v116, %v115
    %v129 = vpack.c.b16 %v118, %v117
    %v130 = vpack.c.b16 %v120, %v119
    %v131 = vpack.c.b16 %v122, %v121
    %v132 = vpack.c.b16 %v124, %v123
    %141 = vmatprep.subr.bf16.mxu0 0
    %142 = vmatpush1.bf16.msra.mxu0 %v132
    %143 = vmatprep.subr.bf16.mxu0 0
    %144 = vmatpush1.bf16.msra.mxu0 %v131
    %145 = vmatprep.subr.bf16.mxu0 0
    %146 = vmatpush1.bf16.msra.mxu0 %v130
    %147 = vmatprep.subr.bf16.mxu0 0
    %148 = vmatpush1.bf16.msra.mxu0 %v129
    %149 = vmatprep.subr.bf16.mxu0 0
    %150 = vmatpush1.bf16.msra.mxu0 %v128
    %151 = vmatprep.subr.bf16.mxu0 0
    %152 = vmatpush1.bf16.msra.mxu0 %v127
    %153 = vmatprep.subr.bf16.mxu0 0
    %154 = vmatpush1.bf16.msra.mxu0 %v126
    %155 = vmatprep.subr.bf16.mxu0 0
    %156 = vmatpush1.bf16.msra.mxu0 %v125
    %157 = vmatprep.subr.bf16.mxu0 0
    %158 = vmatpush2.bf16.msra.mxu0 0
    %159 = vmatprep.subr.bf16.mxu0 0
    %160 = vmatpush2.bf16.msra.mxu0 0
    %161 = vmatprep.subr.bf16.mxu0 0
    %162 = vmatpush2.bf16.msra.mxu0 0
    %163 = vmatprep.subr.bf16.mxu0 0
    %164 = vmatpush2.bf16.msra.mxu0 0
    %165 = vmatprep.subr.bf16.mxu0 0
    %166 = vmatpush2.bf16.msra.mxu0 0
    %167 = vmatprep.subr.bf16.mxu0 0
    %168 = vmatpush2.bf16.msra.mxu0 0
    %169 = vmatprep.subr.bf16.mxu0 0
    %170 = vmatpush2.bf16.msra.mxu0 0
    %171 = vmatprep.subr.bf16.mxu0 0
    %172 = vmatpush2.bf16.msra.mxu0 0
    %173 = vmatprep.mubr.bf16.mxu0 0
    %174 = vmatmul.mubr.bf16.gmra.mxu0 %v76
    %v175 = vpop.f32.mrf.mxu0
    %v176 = vadd.f32 0.0, %v175
    %v177 = vpop.f32.mrf.mxu0
    %v178 = vpop.f32.mrf.mxu0
    %v179 = vadd.f32 0.0, %v178
    %v180 = vpop.f32.mrf.mxu0
    %181 = vdwg.mxu0
    %v182 = vmax.f32 %v176, 0.0
    %v183 = vmax.f32 %v179, 0.0
    %v184 = vpack.c.bf16 %v183, %v182
    %v185 = vld [vmem:[#allocation7] sm:$0xf]
    %v186 = vld [vmem:[#allocation7 + $0x4] sm:$0xf]
    %v187 = vld [vmem:[#allocation7 + $0x8] sm:$0xf]
    %v188 = vld [vmem:[#allocation7 + $0xc] sm:$0xf]
    %v189 = vld [vmem:[#allocation7 + $0x10] sm:$0xf]
    %v190 = vld [vmem:[#allocation7 + $0x14] sm:$0xf]
    %v191 = vld [vmem:[#allocation7 + $0x18] sm:$0xf]
    %v192 = vld [vmem:[#allocation7 + $0x1c] sm:$0xf]
    %v193 = vld [vmem:[#allocation7 + $0x20] sm:$0xf]
    %v194 = vld [vmem:[#allocation7 + $0x24] sm:$0xf]
    %v195 = vld [vmem:[#allocation7 + $0x28] sm:$0xf]
    %v196 = vld [vmem:[#allocation7 + $0x2c] sm:$0xf]
    %v197 = vld [vmem:[#allocation7 + $0x30] sm:$0xf]
    %v198 = vld [vmem:[#allocation7 + $0x34] sm:$0xf]
    %v199 = vld [vmem:[#allocation7 + $0x38] sm:$0xf]
    %v200 = vld [vmem:[#allocation7 + $0x3c] sm:$0xf]
    %v217 = vunpack.c.l.b16 %v185
    %v218 = vunpack.c.l.b16 %v186
    %v219 = vunpack.c.l.b16 %v187
    %v220 = vunpack.c.l.b16 %v188
    %v221 = vunpack.c.l.b16 %v189
    %v222 = vunpack.c.l.b16 %v190
    %v223 = vunpack.c.l.b16 %v191
    %v224 = vunpack.c.l.b16 %v192
    %v225 = vunpack.c.l.b16 %v193
    %v226 = vunpack.c.l.b16 %v194
    %v227 = vunpack.c.l.b16 %v195
    %v228 = vunpack.c.l.b16 %v196
    %v229 = vunpack.c.l.b16 %v197
    %v230 = vunpack.c.l.b16 %v198
    %v231 = vunpack.c.l.b16 %v199
    %v232 = vunpack.c.l.b16 %v200
    %v233 = vpack.c.b16 %v218, %v217
    %v234 = vpack.c.b16 %v220, %v219
    %v235 = vpack.c.b16 %v222, %v221
    %v236 = vpack.c.b16 %v224, %v223
    %v237 = vpack.c.b16 %v226, %v225
    %v238 = vpack.c.b16 %v228, %v227
    %v239 = vpack.c.b16 %v230, %v229
    %v240 = vpack.c.b16 %v232, %v231
    %249 = vmatprep.subr.bf16.mxu0 0
    %250 = vmatpush1.bf16.msra.mxu0 %v240
    %251 = vmatprep.subr.bf16.mxu0 0
    %252 = vmatpush1.bf16.msra.mxu0 %v239
    %253 = vmatprep.subr.bf16.mxu0 0
    %254 = vmatpush1.bf16.msra.mxu0 %v238
    %255 = vmatprep.subr.bf16.mxu0 0
    %256 = vmatpush1.bf16.msra.mxu0 %v237
    %257 = vmatprep.subr.bf16.mxu0 0
    %258 = vmatpush1.bf16.msra.mxu0 %v236
    %259 = vmatprep.subr.bf16.mxu0 0
    %260 = vmatpush1.bf16.msra.mxu0 %v235
    %261 = vmatprep.subr.bf16.mxu0 0
    %262 = vmatpush1.bf16.msra.mxu0 %v234
    %263 = vmatprep.subr.bf16.mxu0 0
    %264 = vmatpush1.bf16.msra.mxu0 %v233
    %265 = vmatprep.subr.bf16.mxu0 0
    %266 = vmatpush2.bf16.msra.mxu0 0
    %267 = vmatprep.subr.bf16.mxu0 0
    %268 = vmatpush2.bf16.msra.mxu0 0
    %269 = vmatprep.subr.bf16.mxu0 0
    %270 = vmatpush2.bf16.msra.mxu0 0
    %271 = vmatprep.subr.bf16.mxu0 0
    %272 = vmatpush2.bf16.msra.mxu0 0
    %273 = vmatprep.subr.bf16.mxu0 0
    %274 = vmatpush2.bf16.msra.mxu0 0
    %275 = vmatprep.subr.bf16.mxu0 0
    %276 = vmatpush2.bf16.msra.mxu0 0
    %277 = vmatprep.subr.bf16.mxu0 0
    %278 = vmatpush2.bf16.msra.mxu0 0
    %279 = vmatprep.subr.bf16.mxu0 0
    %280 = vmatpush2.bf16.msra.mxu0 0
    %281 = vmatprep.mubr.bf16.mxu0 0
    %282 = vmatmul.mubr.bf16.gmra.mxu0 %v184
    %v283 = vpop.f32.mrf.mxu0
    %v284 = vadd.f32 0.0, %v283
    %v285 = vpop.f32.mrf.mxu0
    %v286 = vpop.f32.mrf.mxu0
    %v287 = vadd.f32 0.0, %v286
    %v288 = vpop.f32.mrf.mxu0
    %289 = vdwg.mxu0
    %v290 = vmax.f32 %v284, 0.0
    %v291 = vmax.f32 %v287, 0.0
    %v292 = vpack.c.bf16 %v291, %v290
    %v293 = vld [vmem:[#allocation8] sm:$0xf]
    %v294 = vld [vmem:[#allocation8 + $0x4] sm:$0xf]
    %v295 = vld [vmem:[#allocation8 + $0x8] sm:$0xf]
    %v296 = vld [vmem:[#allocation8 + $0xc] sm:$0xf]
    %v297 = vld [vmem:[#allocation8 + $0x10] sm:$0xf]
    %v298 = vld [vmem:[#allocation8 + $0x14] sm:$0xf]
    %v299 = vld [vmem:[#allocation8 + $0x18] sm:$0xf]
    %v300 = vld [vmem:[#allocation8 + $0x1c] sm:$0xf]
    %v301 = vld [vmem:[#allocation8 + $0x20] sm:$0xf]
    %v302 = vld [vmem:[#allocation8 + $0x24] sm:$0xf]
    %v303 = vld [vmem:[#allocation8 + $0x28] sm:$0xf]
    %v304 = vld [vmem:[#allocation8 + $0x2c] sm:$0xf]
    %v305 = vld [vmem:[#allocation8 + $0x30] sm:$0xf]
    %v306 = vld [vmem:[#allocation8 + $0x34] sm:$0xf]
    %v307 = vld [vmem:[#allocation8 + $0x38] sm:$0xf]
    %v308 = vld [vmem:[#allocation8 + $0x3c] sm:$0xf]
    %v325 = vunpack.c.l.b16 %v293
    %v326 = vunpack.c.l.b16 %v294
    %v327 = vunpack.c.l.b16 %v295
    %v328 = vunpack.c.l.b16 %v296
    %v329 = vunpack.c.l.b16 %v297
    %v330 = vunpack.c.l.b16 %v298
    %v331 = vunpack.c.l.b16 %v299
    %v332 = vunpack.c.l.b16 %v300
    %v333 = vunpack.c.l.b16 %v301
    %v334 = vunpack.c.l.b16 %v302
    %v335 = vunpack.c.l.b16 %v303
    %v336 = vunpack.c.l.b16 %v304
    %v337 = vunpack.c.l.b16 %v305
    %v338 = vunpack.c.l.b16 %v306
    %v339 = vunpack.c.l.b16 %v307
    %v340 = vunpack.c.l.b16 %v308
    %v341 = vpack.c.b16 %v326, %v325
    %v342 = vpack.c.b16 %v328, %v327
    %v343 = vpack.c.b16 %v330, %v329
    %v344 = vpack.c.b16 %v332, %v331
    %v345 = vpack.c.b16 %v334, %v333
    %v346 = vpack.c.b16 %v336, %v335
    %v347 = vpack.c.b16 %v338, %v337
    %v348 = vpack.c.b16 %v340, %v339
    %357 = vmatprep.subr.bf16.mxu0 0
    %358 = vmatpush1.bf16.msra.mxu0 %v348
    %359 = vmatprep.subr.bf16.mxu0 0
    %360 = vmatpush1.bf16.msra.mxu0 %v347
    %361 = vmatprep.subr.bf16.mxu0 0
    %362 = vmatpush1.bf16.msra.mxu0 %v346
    %363 = vmatprep.subr.bf16.mxu0 0
    %364 = vmatpush1.bf16.msra.mxu0 %v345
    %365 = vmatprep.subr.bf16.mxu0 0
    %366 = vmatpush1.bf16.msra.mxu0 %v344
    %367 = vmatprep.subr.bf16.mxu0 0
    %368 = vmatpush1.bf16.msra.mxu0 %v343
    %369 = vmatprep.subr.bf16.mxu0 0
    %370 = vmatpush1.bf16.msra.mxu0 %v342
    %371 = vmatprep.subr.bf16.mxu0 0
    %372 = vmatpush1.bf16.msra.mxu0 %v341
    %373 = vmatprep.subr.bf16.mxu0 0
    %374 = vmatpush2.bf16.msra.mxu0 0
    %375 = vmatprep.subr.bf16.mxu0 0
    %376 = vmatpush2.bf16.msra.mxu0 0
    %377 = vmatprep.subr.bf16.mxu0 0
    %378 = vmatpush2.bf16.msra.mxu0 0
    %379 = vmatprep.subr.bf16.mxu0 0
    %380 = vmatpush2.bf16.msra.mxu0 0
    %381 = vmatprep.subr.bf16.mxu0 0
    %382 = vmatpush2.bf16.msra.mxu0 0
    %383 = vmatprep.subr.bf16.mxu0 0
    %384 = vmatpush2.bf16.msra.mxu0 0
    %385 = vmatprep.subr.bf16.mxu0 0
    %386 = vmatpush2.bf16.msra.mxu0 0
    %387 = vmatprep.subr.bf16.mxu0 0
    %388 = vmatpush2.bf16.msra.mxu0 0
    %389 = vmatprep.mubr.bf16.mxu0 0
    %390 = vmatmul.mubr.bf16.gmra.mxu0 %v292
    %v391 = vpop.f32.mrf.mxu0
    %v392 = vadd.f32 0.0, %v391
    %v393 = vpop.f32.mrf.mxu0
    %v394 = vpop.f32.mrf.mxu0
    %v395 = vadd.f32 0.0, %v394
    %v396 = vpop.f32.mrf.mxu0
    %397 = vdwg.mxu0
    %398 = vst [vmem:[#allocation10] sm:$0xff] %v392
    %399 = vst [vmem:[#allocation10 + $0x8] sm:$0xff] %v395
    // Predicated region
    $region34: #{tpu_custom_call.1} parent=1 // pred_check
      _
    $region35: #{tpu_custom_call.1} parent=1 // pred_check_branch
      %401 = sbr.rel (0) target = $region37
    $region36: #{tpu_custom_call.1} parent=1 // pred_region
      %s403 = ssub.s32 256, 256
      %404 = vsyncadd [#allocation4], %s403
      %s405 = sshll.u32 [#allocation10], 4
      %s406 = int_to_ptr.vmem [resolvable:$true] %s405
      %411 = dma.vmem_to_hbm [thread:$0]  %s406, 256, %s4, [#allocation4], 128, 128, 8
    $region37: #{tpu_custom_call.1} parent=1 // pred_fallthru
      _
    // Predicated region
    $region38: #{tpu_custom_call.1} parent=1 // pred_check
      _
    $region39: #{tpu_custom_call.1} parent=1 // pred_check_branch
      %413 = sbr.rel (0) target = $region41
    $region40: #{tpu_custom_call.1} parent=1 // pred_region
      %414 = dma.done [#allocation4], 256
    $region41: #{tpu_custom_call.1} parent=1 // pred_fallthru
      _
    %415 = vsyncpa [#allocation3], 1
    %416 = vsyncpa [#allocation6], 1
    %417 = vsyncpa [#allocation9], 1
    %418 = vsyncpa [#allocation4], 1

</llo_original>
